<compile_context>
chip_gen: v5e
topology: v5e:2x2
jax: 0.10.0
libtpu: 0.0.40
codegen_flags: <defaults>
</compile_context>

<pallas_src>
import jax
import jax.numpy as jnp
from jax import lax
from jax.experimental import pallas as pl
from jax.experimental.pallas import tpu as pltpu

HIDDEN = 32
INPUT_SIZE = 1


def rnn_kernel(x_ref, h0_ref, wih_ref, whh_ref, b_ref, hall_ref):
    """x_ref: (T, Bp) time-major scalar inputs (INPUT_SIZE == 1).
    h0_ref: (Bp, H), wih_ref: (1, H) = W_ih^T, whh_ref: (H, H) = W_hh^T,
    b_ref: (1, H) = b_ih + b_hh.  hall_ref: (T, Bp, H) all hidden states."""
    T = x_ref.shape[0]

    # --- prologue: input projection for ALL timesteps at once (off the
    # serial recurrence path).  x_t @ W_ih^T == x_t * w_ih_row since I == 1.
    xproj = (x_ref[...][:, :, None] * wih_ref[...][None, :, :]
             + b_ref[...][None, :, :])              # (T, Bp, H), float32

    whh = whh_ref[...]                               # (H, H)
    h = h0_ref[...]                                  # (Bp, H)

    # --- serial recurrence: only one MXU matmul + VPU add + EUP tanh per
    # step on the critical path.  T is small & static -> fully unrolled.
    for t in range(T):
        h = jnp.tanh(xproj[t]
                     + jnp.dot(h, whh, preferred_element_type=jnp.float32))
        hall_ref[t] = h


def rnn_forward(x, h_state, params):
    """x: (B, T, 1) float32; h_state: None or (1, B, H).
    Returns (outs (B, T, 1), h_state (1, B, H)) matching the PyTorch module."""
    B, T, I = x.shape
    assert I == INPUT_SIZE == 1
    H = HIDDEN
    Bp = max(8, ((B + 7) // 8) * 8)                  # pad batch to full sublanes

    wih_row = params["w_ih"].T.astype(jnp.float32)   # (1, H)
    whh_t = params["w_hh"].T.astype(jnp.float32)     # (H, H)
    b = (params["b_ih"] + params["b_hh"]).reshape(1, H).astype(jnp.float32)

    # time-major, squeeze I=1, pad batch with zeros (padded rows are sliced off)
    x_tb = jnp.transpose(x.astype(jnp.float32), (1, 0, 2))[:, :, 0]   # (T, B)
    x_tb = jnp.pad(x_tb, ((0, 0), (0, Bp - B)))                        # (T, Bp)

    if h_state is None:
        h0 = jnp.zeros((Bp, H), jnp.float32)
    else:
        h0 = jnp.pad(h_state[0].astype(jnp.float32), ((0, Bp - B), (0, 0)))

    grid_spec = pltpu.PrefetchScalarGridSpec(
        num_scalar_prefetch=0,
        grid=(1,),                                   # single invocation; time loop is in-kernel
        in_specs=[
            pl.BlockSpec((T, Bp), lambda i: (0, 0)),     # x (time-major)
            pl.BlockSpec((Bp, H), lambda i: (0, 0)),     # h0
            pl.BlockSpec((1, H), lambda i: (0, 0)),      # W_ih^T row
            pl.BlockSpec((H, H), lambda i: (0, 0)),      # W_hh^T
            pl.BlockSpec((1, H), lambda i: (0, 0)),      # b_ih + b_hh
        ],
        out_specs=pl.BlockSpec((T, Bp, H), lambda i: (0, 0, 0)),   # h_all
    )

    hall = pl.pallas_call(
        rnn_kernel,
        out_shape=jax.ShapeDtypeStruct((T, Bp, H), jnp.float32),
        grid_spec=grid_spec,
        compiler_params=pltpu.CompilerParams(
            dimension_semantics=("arbitrary",)),
    )(x_tb, h0, wih_row, whh_t, b)

    # Non-recurrent 32->1 projection done once, outside the serial kernel.
    r_out = jnp.transpose(hall[:, :B, :], (1, 0, 2))                  # (B, T, H)
    outs = r_out @ params["w_out"].T.astype(jnp.float32) + params["b_out"]
    h_last = hall[T - 1, :B, :]                                       # (B, H)
    # TODO(synk): for large B on v7x, add a "parallel" batch grid axis so both
    # TensorCores run independent batch slices (time stays serial in-kernel).
    return outs, h_last[None]                                         # (1, B, H)


def rnn_reference(x, h_state, params):
    """Pure-JAX reference (lax.scan) for correctness check."""
    B, T, I = x.shape
    H = HIDDEN
    h0 = jnp.zeros((B, H), jnp.float32) if h_state is None else h_state[0]

    def step(h, x_t):
        h_new = jnp.tanh(x_t @ params["w_ih"].T + params["b_ih"]
                         + h @ params["w_hh"].T + params["b_hh"])
        o = h_new @ params["w_out"].T + params["b_out"]
        return h_new, o

    h_last, outs_t = lax.scan(step, h0, jnp.transpose(x, (1, 0, 2)))
    return jnp.transpose(outs_t, (1, 0, 2)), h_last[None]


def init_params(key):
    H, I = HIDDEN, INPUT_SIZE
    k = 1.0 / jnp.sqrt(H)
    keys = jax.random.split(key, 6)
    u = lambda kk, shape: jax.random.uniform(kk, shape, jnp.float32, -k, k)
    return {
        "w_ih": u(keys[0], (H, I)),
        "w_hh": u(keys[1], (H, H)),
        "b_ih": u(keys[2], (H,)),
        "b_hh": u(keys[3], (H,)),
        "w_out": u(keys[4], (1, H)),
        "b_out": u(keys[5], (1,)),
    }


if __name__ == "__main__":
    key = jax.random.PRNGKey(0)
    kx, kp = jax.random.split(key)

    B, T = 2, 8
    x = jax.random.normal(kx, (B, T, INPUT_SIZE), jnp.float32)
    params = init_params(kp)

    # First call: h_state = None (matches the module's initial global state).
    outs, h_new = rnn_forward(x, None, params)
    outs = jax.block_until_ready(outs)
    h_new = jax.block_until_ready(h_new)

    ref_outs, ref_h = rnn_reference(x, None, params)
    assert outs.shape == (B, T, 1) and h_new.shape == (1, B, HIDDEN)
    assert jnp.allclose(outs, ref_outs, atol=1e-5, rtol=1e-5)
    assert jnp.allclose(h_new, ref_h, atol=1e-5, rtol=1e-5)

    # Second call: carried hidden state (non-None branch).
    outs2, h2 = rnn_forward(x, h_new, params)
    outs2 = jax.block_until_ready(outs2)
    ref_outs2, ref_h2 = rnn_reference(x, ref_h, params)
    assert jnp.allclose(outs2, ref_outs2, atol=1e-5, rtol=1e-5)
    assert jnp.allclose(h2, ref_h2, atol=1e-5, rtol=1e-5)

    print("KERNEL_OK")
</pallas_src>

<mosaic_0001>
module attributes {stable_mosaic.version = 11 : i64} {
  func.func @rnn_kernel(%arg0: i32, %arg1: memref<8x8xf32, #tpu.memory_space<vmem>>, %arg2: memref<8x32xf32, #tpu.memory_space<vmem>>, %arg3: memref<1x32xf32, #tpu.memory_space<vmem>>, %arg4: memref<32x32xf32, #tpu.memory_space<vmem>>, %arg5: memref<1x32xf32, #tpu.memory_space<vmem>>, %arg6: memref<8x8x32xf32, #tpu.memory_space<vmem>>) attributes {dimension_semantics = [#tpu.dimension_semantics<arbitrary>], iteration_bounds = array<i64: 1>, scalar_prefetch = 0 : i64, scratch_operands = 0 : i64, tpu.core_type = #tpu.core_type<tc>, window_params = [{pipeline_mode = #tpu.pipeline_mode<synchronous>, transform_indices = @transform_0, window_bounds = array<i64: 8, 8>}, {pipeline_mode = #tpu.pipeline_mode<synchronous>, transform_indices = @transform_1, window_bounds = array<i64: 8, 32>}, {pipeline_mode = #tpu.pipeline_mode<synchronous>, transform_indices = @transform_2, window_bounds = array<i64: 1, 32>}, {pipeline_mode = #tpu.pipeline_mode<synchronous>, transform_indices = @transform_3, window_bounds = array<i64: 32, 32>}, {pipeline_mode = #tpu.pipeline_mode<synchronous>, transform_indices = @transform_4, window_bounds = array<i64: 1, 32>}, {pipeline_mode = #tpu.pipeline_mode<synchronous>, transform_indices = @transform_5, window_bounds = array<i64: 8, 8, 32>}]} {
    %c0 = arith.constant 0 : index
    %c0_0 = arith.constant 0 : index
    %0 = vector.load %arg1[%c0, %c0_0] : memref<8x8xf32, #tpu.memory_space<vmem>>, vector<8x8xf32>
    %1 = vector.shape_cast %0 : vector<8x8xf32> to vector<8x8x1xf32>
    %c0_1 = arith.constant 0 : index
    %c0_2 = arith.constant 0 : index
    %2 = vector.load %arg3[%c0_1, %c0_2] : memref<1x32xf32, #tpu.memory_space<vmem>>, vector<1x32xf32>
    %3 = vector.shape_cast %2 : vector<1x32xf32> to vector<1x1x32xf32>
    %4 = vector.broadcast %1 : vector<8x8x1xf32> to vector<8x8x32xf32>
    %5 = vector.broadcast %3 : vector<1x1x32xf32> to vector<8x8x32xf32>
    %6 = arith.mulf %4, %5 : vector<8x8x32xf32>
    %c0_3 = arith.constant 0 : index
    %c0_4 = arith.constant 0 : index
    %7 = vector.load %arg5[%c0_3, %c0_4] : memref<1x32xf32, #tpu.memory_space<vmem>>, vector<1x32xf32>
    %8 = vector.shape_cast %7 : vector<1x32xf32> to vector<1x1x32xf32>
    %9 = vector.broadcast %8 : vector<1x1x32xf32> to vector<8x8x32xf32>
    %10 = arith.addf %6, %9 : vector<8x8x32xf32>
    %c0_5 = arith.constant 0 : index
    %c0_6 = arith.constant 0 : index
    %11 = vector.load %arg4[%c0_5, %c0_6] : memref<32x32xf32, #tpu.memory_space<vmem>>, vector<32x32xf32>
    %c0_7 = arith.constant 0 : index
    %c0_8 = arith.constant 0 : index
    %12 = vector.load %arg2[%c0_7, %c0_8] : memref<8x32xf32, #tpu.memory_space<vmem>>, vector<8x32xf32>
    %13 = vector.extract_strided_slice %10 {offsets = [0, 0, 0], sizes = [1, 8, 32], strides = [1, 1, 1]} : vector<8x8x32xf32> to vector<1x8x32xf32>
    %14 = vector.shape_cast %13 : vector<1x8x32xf32> to vector<8x32xf32>
    %cst = arith.constant dense<0.000000e+00> : vector<8x32xf32>
    %15 = tpu.matmul %12, %11, %cst {dimension_numbers = #tpu.dot_dimension_numbers<[1], [0], [0], [1], [0, 0, 1, 1], [], []>} : vector<8x32xf32>, vector<32x32xf32>, vector<8x32xf32> -> vector<8x32xf32>
    %16 = arith.addf %14, %15 : vector<8x32xf32>
    %17 = math.tanh %16 : vector<8x32xf32>
    %c0_9 = arith.constant 0 : index
    %c0_10 = arith.constant 0 : index
    %c0_11 = arith.constant 0 : index
    %18 = vector.load %arg6[%c0_9, %c0_10, %c0_11] : memref<8x8x32xf32, #tpu.memory_space<vmem>>, vector<1x8x32xf32>
    %19 = vector.shape_cast %18 : vector<1x8x32xf32> to vector<8x32xf32>
    %20 = vector.shape_cast %17 : vector<8x32xf32> to vector<1x8x32xf32>
    tpu.vector_store %arg6[%c0_9, %c0_10, %c0_11], %20 {strides = array<i32>} : memref<8x8x32xf32, #tpu.memory_space<vmem>>, vector<1x8x32xf32>,
    %21 = vector.extract_strided_slice %10 {offsets = [1, 0, 0], sizes = [1, 8, 32], strides = [1, 1, 1]} : vector<8x8x32xf32> to vector<1x8x32xf32>
    %22 = vector.shape_cast %21 : vector<1x8x32xf32> to vector<8x32xf32>
    %cst_12 = arith.constant dense<0.000000e+00> : vector<8x32xf32>
    %23 = tpu.matmul %17, %11, %cst_12 {dimension_numbers = #tpu.dot_dimension_numbers<[1], [0], [0], [1], [0, 0, 1, 1], [], []>} : vector<8x32xf32>, vector<32x32xf32>, vector<8x32xf32> -> vector<8x32xf32>
    %24 = arith.addf %22, %23 : vector<8x32xf32>
    %25 = math.tanh %24 : vector<8x32xf32>
    %c1 = arith.constant 1 : index
    %c0_13 = arith.constant 0 : index
    %c0_14 = arith.constant 0 : index
    %26 = vector.load %arg6[%c1, %c0_13, %c0_14] : memref<8x8x32xf32, #tpu.memory_space<vmem>>, vector<1x8x32xf32>
    %27 = vector.shape_cast %26 : vector<1x8x32xf32> to vector<8x32xf32>
    %28 = vector.shape_cast %25 : vector<8x32xf32> to vector<1x8x32xf32>
    tpu.vector_store %arg6[%c1, %c0_13, %c0_14], %28 {strides = array<i32>} : memref<8x8x32xf32, #tpu.memory_space<vmem>>, vector<1x8x32xf32>,
    %29 = vector.extract_strided_slice %10 {offsets = [2, 0, 0], sizes = [1, 8, 32], strides = [1, 1, 1]} : vector<8x8x32xf32> to vector<1x8x32xf32>
    %30 = vector.shape_cast %29 : vector<1x8x32xf32> to vector<8x32xf32>
    %cst_15 = arith.constant dense<0.000000e+00> : vector<8x32xf32>
    %31 = tpu.matmul %25, %11, %cst_15 {dimension_numbers = #tpu.dot_dimension_numbers<[1], [0], [0], [1], [0, 0, 1, 1], [], []>} : vector<8x32xf32>, vector<32x32xf32>, vector<8x32xf32> -> vector<8x32xf32>
    %32 = arith.addf %30, %31 : vector<8x32xf32>
    %33 = math.tanh %32 : vector<8x32xf32>
    %c2 = arith.constant 2 : index
    %c0_16 = arith.constant 0 : index
    %c0_17 = arith.constant 0 : index
    %34 = vector.load %arg6[%c2, %c0_16, %c0_17] : memref<8x8x32xf32, #tpu.memory_space<vmem>>, vector<1x8x32xf32>
    %35 = vector.shape_cast %34 : vector<1x8x32xf32> to vector<8x32xf32>
    %36 = vector.shape_cast %33 : vector<8x32xf32> to vector<1x8x32xf32>
    tpu.vector_store %arg6[%c2, %c0_16, %c0_17], %36 {strides = array<i32>} : memref<8x8x32xf32, #tpu.memory_space<vmem>>, vector<1x8x32xf32>,
    %37 = vector.extract_strided_slice %10 {offsets = [3, 0, 0], sizes = [1, 8, 32], strides = [1, 1, 1]} : vector<8x8x32xf32> to vector<1x8x32xf32>
    %38 = vector.shape_cast %37 : vector<1x8x32xf32> to vector<8x32xf32>
    %cst_18 = arith.constant dense<0.000000e+00> : vector<8x32xf32>
    %39 = tpu.matmul %33, %11, %cst_18 {dimension_numbers = #tpu.dot_dimension_numbers<[1], [0], [0], [1], [0, 0, 1, 1], [], []>} : vector<8x32xf32>, vector<32x32xf32>, vector<8x32xf32> -> vector<8x32xf32>
    %40 = arith.addf %38, %39 : vector<8x32xf32>
    %41 = math.tanh %40 : vector<8x32xf32>
    %c3 = arith.constant 3 : index
    %c0_19 = arith.constant 0 : index
    %c0_20 = arith.constant 0 : index
    %42 = vector.load %arg6[%c3, %c0_19, %c0_20] : memref<8x8x32xf32, #tpu.memory_space<vmem>>, vector<1x8x32xf32>
    %43 = vector.shape_cast %42 : vector<1x8x32xf32> to vector<8x32xf32>
    %44 = vector.shape_cast %41 : vector<8x32xf32> to vector<1x8x32xf32>
    tpu.vector_store %arg6[%c3, %c0_19, %c0_20], %44 {strides = array<i32>} : memref<8x8x32xf32, #tpu.memory_space<vmem>>, vector<1x8x32xf32>,
    %45 = vector.extract_strided_slice %10 {offsets = [4, 0, 0], sizes = [1, 8, 32], strides = [1, 1, 1]} : vector<8x8x32xf32> to vector<1x8x32xf32>
    %46 = vector.shape_cast %45 : vector<1x8x32xf32> to vector<8x32xf32>
    %cst_21 = arith.constant dense<0.000000e+00> : vector<8x32xf32>
    %47 = tpu.matmul %41, %11, %cst_21 {dimension_numbers = #tpu.dot_dimension_numbers<[1], [0], [0], [1], [0, 0, 1, 1], [], []>} : vector<8x32xf32>, vector<32x32xf32>, vector<8x32xf32> -> vector<8x32xf32>
    %48 = arith.addf %46, %47 : vector<8x32xf32>
    %49 = math.tanh %48 : vector<8x32xf32>
    %c4 = arith.constant 4 : index
    %c0_22 = arith.constant 0 : index
    %c0_23 = arith.constant 0 : index
    %50 = vector.load %arg6[%c4, %c0_22, %c0_23] : memref<8x8x32xf32, #tpu.memory_space<vmem>>, vector<1x8x32xf32>
    %51 = vector.shape_cast %50 : vector<1x8x32xf32> to vector<8x32xf32>
    %52 = vector.shape_cast %49 : vector<8x32xf32> to vector<1x8x32xf32>
    tpu.vector_store %arg6[%c4, %c0_22, %c0_23], %52 {strides = array<i32>} : memref<8x8x32xf32, #tpu.memory_space<vmem>>, vector<1x8x32xf32>,
    %53 = vector.extract_strided_slice %10 {offsets = [5, 0, 0], sizes = [1, 8, 32], strides = [1, 1, 1]} : vector<8x8x32xf32> to vector<1x8x32xf32>
    %54 = vector.shape_cast %53 : vector<1x8x32xf32> to vector<8x32xf32>
    %cst_24 = arith.constant dense<0.000000e+00> : vector<8x32xf32>
    %55 = tpu.matmul %49, %11, %cst_24 {dimension_numbers = #tpu.dot_dimension_numbers<[1], [0], [0], [1], [0, 0, 1, 1], [], []>} : vector<8x32xf32>, vector<32x32xf32>, vector<8x32xf32> -> vector<8x32xf32>
    %56 = arith.addf %54, %55 : vector<8x32xf32>
    %57 = math.tanh %56 : vector<8x32xf32>
    %c5 = arith.constant 5 : index
    %c0_25 = arith.constant 0 : index
    %c0_26 = arith.constant 0 : index
    %58 = vector.load %arg6[%c5, %c0_25, %c0_26] : memref<8x8x32xf32, #tpu.memory_space<vmem>>, vector<1x8x32xf32>
    %59 = vector.shape_cast %58 : vector<1x8x32xf32> to vector<8x32xf32>
    %60 = vector.shape_cast %57 : vector<8x32xf32> to vector<1x8x32xf32>
    tpu.vector_store %arg6[%c5, %c0_25, %c0_26], %60 {strides = array<i32>} : memref<8x8x32xf32, #tpu.memory_space<vmem>>, vector<1x8x32xf32>,
    %61 = vector.extract_strided_slice %10 {offsets = [6, 0, 0], sizes = [1, 8, 32], strides = [1, 1, 1]} : vector<8x8x32xf32> to vector<1x8x32xf32>
    %62 = vector.shape_cast %61 : vector<1x8x32xf32> to vector<8x32xf32>
    %cst_27 = arith.constant dense<0.000000e+00> : vector<8x32xf32>
    %63 = tpu.matmul %57, %11, %cst_27 {dimension_numbers = #tpu.dot_dimension_numbers<[1], [0], [0], [1], [0, 0, 1, 1], [], []>} : vector<8x32xf32>, vector<32x32xf32>, vector<8x32xf32> -> vector<8x32xf32>
    %64 = arith.addf %62, %63 : vector<8x32xf32>
    %65 = math.tanh %64 : vector<8x32xf32>
    %c6 = arith.constant 6 : index
    %c0_28 = arith.constant 0 : index
    %c0_29 = arith.constant 0 : index
    %66 = vector.load %arg6[%c6, %c0_28, %c0_29] : memref<8x8x32xf32, #tpu.memory_space<vmem>>, vector<1x8x32xf32>
    %67 = vector.shape_cast %66 : vector<1x8x32xf32> to vector<8x32xf32>
    %68 = vector.shape_cast %65 : vector<8x32xf32> to vector<1x8x32xf32>
    tpu.vector_store %arg6[%c6, %c0_28, %c0_29], %68 {strides = array<i32>} : memref<8x8x32xf32, #tpu.memory_space<vmem>>, vector<1x8x32xf32>,
    %69 = vector.extract_strided_slice %10 {offsets = [7, 0, 0], sizes = [1, 8, 32], strides = [1, 1, 1]} : vector<8x8x32xf32> to vector<1x8x32xf32>
    %70 = vector.shape_cast %69 : vector<1x8x32xf32> to vector<8x32xf32>
    %cst_30 = arith.constant dense<0.000000e+00> : vector<8x32xf32>
    %71 = tpu.matmul %65, %11, %cst_30 {dimension_numbers = #tpu.dot_dimension_numbers<[1], [0], [0], [1], [0, 0, 1, 1], [], []>} : vector<8x32xf32>, vector<32x32xf32>, vector<8x32xf32> -> vector<8x32xf32>
    %72 = arith.addf %70, %71 : vector<8x32xf32>
    %73 = math.tanh %72 : vector<8x32xf32>
    %c7 = arith.constant 7 : index
    %c0_31 = arith.constant 0 : index
    %c0_32 = arith.constant 0 : index
    %74 = vector.load %arg6[%c7, %c0_31, %c0_32] : memref<8x8x32xf32, #tpu.memory_space<vmem>>, vector<1x8x32xf32>
    %75 = vector.shape_cast %74 : vector<1x8x32xf32> to vector<8x32xf32>
    %76 = vector.shape_cast %73 : vector<8x32xf32> to vector<1x8x32xf32>
    tpu.vector_store %arg6[%c7, %c0_31, %c0_32], %76 {strides = array<i32>} : memref<8x8x32xf32, #tpu.memory_space<vmem>>, vector<1x8x32xf32>,
    return
  }
  func.func @transform_0(%arg0: i32) -> (i32, i32) {
    %c0_i32 = arith.constant 0 : i32
    %c0_i32_0 = arith.constant 0 : i32
    %c0_i32_1 = arith.constant 0 : i32
    return %c0_i32, %c0_i32_0 : i32, i32
  }
  func.func @transform_1(%arg0: i32) -> (i32, i32) {
    %c0_i32 = arith.constant 0 : i32
    %c0_i32_0 = arith.constant 0 : i32
    %c0_i32_1 = arith.constant 0 : i32
    return %c0_i32, %c0_i32_0 : i32, i32
  }
  func.func @transform_2(%arg0: i32) -> (i32, i32) {
    %c0_i32 = arith.constant 0 : i32
    %c0_i32_0 = arith.constant 0 : i32
    %c0_i32_1 = arith.constant 0 : i32
    return %c0_i32, %c0_i32_0 : i32, i32
  }
  func.func @transform_3(%arg0: i32) -> (i32, i32) {
    %c0_i32 = arith.constant 0 : i32
    %c0_i32_0 = arith.constant 0 : i32
    %c0_i32_1 = arith.constant 0 : i32
    return %c0_i32, %c0_i32_0 : i32, i32
  }
  func.func @transform_4(%arg0: i32) -> (i32, i32) {
    %c0_i32 = arith.constant 0 : i32
    %c0_i32_0 = arith.constant 0 : i32
    %c0_i32_1 = arith.constant 0 : i32
    return %c0_i32, %c0_i32_0 : i32, i32
  }
  func.func @transform_5(%arg0: i32) -> (i32, i32, i32) {
    %c0_i32 = arith.constant 0 : i32
    %c0_i32_0 = arith.constant 0 : i32
    %c0_i32_1 = arith.constant 0 : i32
    %c0_i32_2 = arith.constant 0 : i32
    return %c0_i32, %c0_i32_0, %c0_i32_1 : i32, i32, i32
  }
}

</mosaic_0001>

<llo_original>
// kernel: tpu_custom_call.1
$region0: #{tpu_custom_call.1}
  #allocation0 [shape = 'u32[]', space=smem, size = 0x4, offset = 0x4, fixed_abs, tag = 'smem constant byte address 0x4 - core index']
  #allocation1 [shape = 'u32[72,128]{1,0:T(1,128)}', space=vmem, size = 0x9000, scoped, tag = 'internal scratch']
  %s0 = inlined_call_operand.hbm [shape: f32[8,8], index: 0, kind: input, shape index: {}]
  %s1 = inlined_call_operand.hbm [shape: f32[8,32], index: 1, kind: input, shape index: {}]
  %s2 = inlined_call_operand.vmem [shape: f32[1,32], index: 2, kind: input, shape index: {}]
  %s3 = inlined_call_operand.hbm [shape: f32[32,32], index: 3, kind: input, shape index: {}]
  %s4 = inlined_call_operand.vmem [shape: f32[1,32], index: 4, kind: input, shape index: {}]
  %s5 = inlined_call_operand.hbm [shape: f32[8,8,32], index: 5, kind: output, shape index: {}]
  %s6 = sld [smem:[#allocation0]]
  $region42: #{tpu_custom_call.1} parent=0
    _
  %s8 = ssub.s32 1, %s6
  %s9 = scalar_select 0, %s8, %s6
  $region1: #{tpu_custom_call.1} parent=0
    #allocation2 [shape = 'u8[4096]{0}', space=vmem, size = 0x1000, scoped, tag = 'input window, operand 0, single buffered']
    #allocation3 [shape = 's32[1]{0}', space=sflag, size = 0x4, scoped, tag = 'scoped memory for tpu_custom_call.1']
    #allocation4 [shape = 's32[1]{0}', space=sflag, size = 0x4, scoped, tag = 'scoped memory for tpu_custom_call.1']
    #allocation5 [shape = 'u8[4096]{0}', space=vmem, size = 0x1000, scoped, tag = 'input window, operand 1, single buffered']
    #allocation6 [shape = 's32[1]{0}', space=sflag, size = 0x4, scoped, tag = 'scoped memory for tpu_custom_call.1']
    #allocation7 [shape = 'u8[16384]{0}', space=vmem, size = 0x4000, scoped, tag = 'input window, operand 3, single buffered']
    #allocation8 [shape = 'u8[32768]{0}', space=vmem, size = 0x8000, scoped, tag = 'output window, operand 0, single buffered']
    %10 = vsyncpa [#allocation3], 0
    %11 = vsyncpa [#allocation6], 0
    %12 = vsyncpa [#allocation4], 0
    // Predicated region
    $region2: #{tpu_custom_call.1} parent=1 // pred_check
      _
    $region3: #{tpu_custom_call.1} parent=1 // pred_check_branch
      %14 = sbr.rel (0) target = $region5
    $region4: #{tpu_custom_call.1} parent=1 // pred_region
      %16 = vsyncadd [#allocation3], 0
      %s18 = sshll.u32 %s0, 4
      %s19 = int_to_ptr.hbm [resolvable:$true] %s18
      %s20 = sshll.u32 [#allocation2], 4
      %s21 = int_to_ptr.vmem [resolvable:$true] %s20
      %23 = dma.hbm_to_vmem [thread:$0]  %s19, 128, %s21, [#allocation3]
    $region5: #{tpu_custom_call.1} parent=1 // pred_fallthru
      _
    // Predicated region
    $region6: #{tpu_custom_call.1} parent=1 // pred_check
      _
    $region7: #{tpu_custom_call.1} parent=1 // pred_check_branch
      %25 = sbr.rel (0) target = $region9
    $region8: #{tpu_custom_call.1} parent=1 // pred_region
      %27 = vsyncadd [#allocation6], 0
      %s29 = sshll.u32 %s1, 4
      %s30 = int_to_ptr.hbm [resolvable:$true] %s29
      %s31 = sshll.u32 [#allocation5], 4
      %s32 = int_to_ptr.vmem [resolvable:$true] %s31
      %34 = dma.hbm_to_vmem [thread:$0]  %s30, 128, %s32, [#allocation6]
    $region9: #{tpu_custom_call.1} parent=1 // pred_fallthru
      _
    // Predicated region
    $region10: #{tpu_custom_call.1} parent=1 // pred_check
      _
    $region11: #{tpu_custom_call.1} parent=1 // pred_check_branch
      %36 = sbr.rel (0) target = $region13
    $region12: #{tpu_custom_call.1} parent=1 // pred_region
      _
    $region13: #{tpu_custom_call.1} parent=1 // pred_fallthru
      _
    // Predicated region
    $region14: #{tpu_custom_call.1} parent=1 // pred_check
      _
    $region15: #{tpu_custom_call.1} parent=1 // pred_check_branch
      %38 = sbr.rel (0) target = $region17
    $region16: #{tpu_custom_call.1} parent=1 // pred_region
      %40 = vsyncadd [#allocation6], 0
      %s41 = sshll.u32 %s3, 4
      %s42 = int_to_ptr.hbm [resolvable:$true] %s41
      %s43 = sshll.u32 [#allocation7], 4
      %s44 = int_to_ptr.vmem [resolvable:$true] %s43
      %49 = dma.hbm_to_vmem [thread:$0]  %s42, 512, %s44, [#allocation6], 128, 128, 8
    $region17: #{tpu_custom_call.1} parent=1 // pred_fallthru
      _
    // Predicated region
    $region18: #{tpu_custom_call.1} parent=1 // pred_check
      _
    $region19: #{tpu_custom_call.1} parent=1 // pred_check_branch
      %51 = sbr.rel (0) target = $region21
    $region20: #{tpu_custom_call.1} parent=1 // pred_region
      _
    $region21: #{tpu_custom_call.1} parent=1 // pred_fallthru
      _
    // Predicated region
    $region22: #{tpu_custom_call.1} parent=1 // pred_check
      _
    $region23: #{tpu_custom_call.1} parent=1 // pred_check_branch
      %53 = sbr.rel (0) target = $region25
    $region24: #{tpu_custom_call.1} parent=1 // pred_region
      %55 = dma.done [#allocation3], 128
    $region25: #{tpu_custom_call.1} parent=1 // pred_fallthru
      _
    // Predicated region
    $region26: #{tpu_custom_call.1} parent=1 // pred_check
      _
    $region27: #{tpu_custom_call.1} parent=1 // pred_check_branch
      %57 = sbr.rel (0) target = $region29
    $region28: #{tpu_custom_call.1} parent=1 // pred_region
      %59 = dma.done [#allocation6], 128
    $region29: #{tpu_custom_call.1} parent=1 // pred_fallthru
      _
    // Predicated region
    $region30: #{tpu_custom_call.1} parent=1 // pred_check
      _
    $region31: #{tpu_custom_call.1} parent=1 // pred_check_branch
      %61 = sbr.rel (0) target = $region33
    $region32: #{tpu_custom_call.1} parent=1 // pred_region
      %63 = dma.done [#allocation6], 512
    $region33: #{tpu_custom_call.1} parent=1 // pred_fallthru
      _
    %v64 = vld [vmem:[#allocation2] sm:$0xff]
    %v65 = vperm.slane %v64, 0
    %v66 = vlaneseq
    %v67 = vshrl.u32 %v66, 7
    %69 = vset.pattern.permute.xlu0 %v67
    %70 = vperm.xlu0 %69, %v65
    %v71 = vpop.permute.xlu0 %70
    %v72 = vperm.slane %v64, 1
    %v73 = vlaneseq
    %v74 = vshrl.u32 %v73, 7
    %76 = vset.pattern.permute.xlu0 %v74
    %77 = vperm.xlu0 %76, %v72
    %v78 = vpop.permute.xlu0 %77
    %v79 = vperm.slane %v64, 2
    %v80 = vlaneseq
    %v81 = vshrl.u32 %v80, 7
    %83 = vset.pattern.permute.xlu0 %v81
    %84 = vperm.xlu0 %83, %v79
    %v85 = vpop.permute.xlu0 %84
    %v86 = vperm.slane %v64, 3
    %v87 = vlaneseq
    %v88 = vshrl.u32 %v87, 7
    %90 = vset.pattern.permute.xlu0 %v88
    %91 = vperm.xlu0 %90, %v86
    %v92 = vpop.permute.xlu0 %91
    %v93 = vperm.slane %v64, 4
    %v94 = vlaneseq
    %v95 = vshrl.u32 %v94, 7
    %97 = vset.pattern.permute.xlu0 %v95
    %98 = vperm.xlu0 %97, %v93
    %v99 = vpop.permute.xlu0 %98
    %v100 = vperm.slane %v64, 5
    %v101 = vlaneseq
    %v102 = vshrl.u32 %v101, 7
    %104 = vset.pattern.permute.xlu0 %v102
    %105 = vperm.xlu0 %104, %v100
    %v106 = vpop.permute.xlu0 %105
    %v107 = vperm.slane %v64, 6
    %v108 = vlaneseq
    %v109 = vshrl.u32 %v108, 7
    %111 = vset.pattern.permute.xlu0 %v109
    %112 = vperm.xlu0 %111, %v107
    %v113 = vpop.permute.xlu0 %112
    %v114 = vperm.slane %v64, 7
    %v115 = vlaneseq
    %v116 = vshrl.u32 %v115, 7
    %118 = vset.pattern.permute.xlu0 %v116
    %119 = vperm.xlu0 %118, %v114
    %v120 = vpop.permute.xlu0 %119
    %v121 = vld [vmem:[%s2] sm:$0x1]
    %v123 = vperm.slane %v121, 0
    %v125 = vmul.f32 %v71, %v123
    %v126 = vmul.f32 %v78, %v123
    %v127 = vmul.f32 %v85, %v123
    %v128 = vmul.f32 %v92, %v123
    %v129 = vmul.f32 %v99, %v123
    %v130 = vmul.f32 %v106, %v123
    %v131 = vmul.f32 %v113, %v123
    %v132 = vmul.f32 %v120, %v123
    %v133 = vld [vmem:[%s4] sm:$0x1]
    %v135 = vperm.slane %v133, 0
    %v137 = vadd.f32 %v125, %v135
    %v138 = vadd.f32 %v126, %v135
    %v139 = vadd.f32 %v127, %v135
    %v140 = vadd.f32 %v128, %v135
    %v141 = vadd.f32 %v129, %v135
    %v142 = vadd.f32 %v130, %v135
    %v143 = vadd.f32 %v131, %v135
    %v144 = vadd.f32 %v132, %v135
    %v145 = vld [vmem:[#allocation7] sm:$0xff]
    %v146 = vld [vmem:[#allocation7 + $0x8] sm:$0xff]
    %v147 = vld [vmem:[#allocation7 + $0x10] sm:$0xff]
    %v148 = vld [vmem:[#allocation7 + $0x18] sm:$0xff]
    %v149 = vld [vmem:[#allocation5] sm:$0xff]
    %vm150 = vcmask 261120
    %v152 = vsel %vm150, %v149, 0
    %154 = vmatpush.msra.mxu0 0.0
    %155 = vmatpush.msra.mxu0 0.0
    %156 = vmatpush.msra.mxu0 0.0
    %157 = vmatpush.msra.mxu0 0.0
    %158 = vmatpush.msra.mxu0 0.0
    %159 = vmatpush.msra.mxu0 0.0
    %160 = vmatpush.msra.mxu0 0.0
    %161 = vmatpush.msra.mxu0 0.0
    %162 = vmatpush.msra.mxu0 0.0
    %163 = vmatpush.msra.mxu0 0.0
    %164 = vmatpush.msra.mxu0 0.0
    %165 = vmatpush.msra.mxu0 0.0
    %166 = vmatpush.msra.mxu0 %v148
    %167 = vmatpush.msra.mxu0 %v147
    %168 = vmatpush.msra.mxu0 %v146
    %169 = vmatpush.msra.mxu0 %v145
    %170 = vmatmul.f32.gmra.mxu0 %v152
    %v171 = vpop.f32.mrf.mxu0
    %v172 = vadd.f32 0.0, %v171
    %173 = vdwg.mxu0
    %v174 = vadd.f32 %v137, %v172
    %v175 = vtanh.pop %v174
    %176 = vst.msk [vmem:[#allocation8] sm:$0xff] %vm150, %v175
    %v178 = vsel %vm150, %v175, 0
    %180 = vmatpush.msra.mxu0 0.0
    %181 = vmatpush.msra.mxu0 0.0
    %182 = vmatpush.msra.mxu0 0.0
    %183 = vmatpush.msra.mxu0 0.0
    %184 = vmatpush.msra.mxu0 0.0
    %185 = vmatpush.msra.mxu0 0.0
    %186 = vmatpush.msra.mxu0 0.0
    %187 = vmatpush.msra.mxu0 0.0
    %188 = vmatpush.msra.mxu0 0.0
    %189 = vmatpush.msra.mxu0 0.0
    %190 = vmatpush.msra.mxu0 0.0
    %191 = vmatpush.msra.mxu0 0.0
    %192 = vmatpush.msra.mxu0 %v148
    %193 = vmatpush.msra.mxu0 %v147
    %194 = vmatpush.msra.mxu0 %v146
    %195 = vmatpush.msra.mxu0 %v145
    %196 = vmatmul.f32.gmra.mxu0 %v178
    %v197 = vpop.f32.mrf.mxu0
    %v198 = vadd.f32 0.0, %v197
    %199 = vdwg.mxu0
    %v200 = vadd.f32 %v138, %v198
    %v201 = vtanh.pop %v200
    %s202 = scalar_lea.vmem [#allocation8], 8
    %203 = vst.msk [vmem:[%s202] sm:$0xff] %vm150, %v201
    %v205 = vsel %vm150, %v201, 0
    %207 = vmatpush.msra.mxu0 0.0
    %208 = vmatpush.msra.mxu0 0.0
    %209 = vmatpush.msra.mxu0 0.0
    %210 = vmatpush.msra.mxu0 0.0
    %211 = vmatpush.msra.mxu0 0.0
    %212 = vmatpush.msra.mxu0 0.0
    %213 = vmatpush.msra.mxu0 0.0
    %214 = vmatpush.msra.mxu0 0.0
    %215 = vmatpush.msra.mxu0 0.0
    %216 = vmatpush.msra.mxu0 0.0
    %217 = vmatpush.msra.mxu0 0.0
    %218 = vmatpush.msra.mxu0 0.0
    %219 = vmatpush.msra.mxu0 %v148
    %220 = vmatpush.msra.mxu0 %v147
    %221 = vmatpush.msra.mxu0 %v146
    %222 = vmatpush.msra.mxu0 %v145
    %223 = vmatmul.f32.gmra.mxu0 %v205
    %v224 = vpop.f32.mrf.mxu0
    %v225 = vadd.f32 0.0, %v224
    %226 = vdwg.mxu0
    %v227 = vadd.f32 %v139, %v225
    %v228 = vtanh.pop %v227
    %s229 = scalar_lea.vmem [#allocation8], 16
    %230 = vst.msk [vmem:[%s229] sm:$0xff] %vm150, %v228
    %v232 = vsel %vm150, %v228, 0
    %234 = vmatpush.msra.mxu0 0.0
    %235 = vmatpush.msra.mxu0 0.0
    %236 = vmatpush.msra.mxu0 0.0
    %237 = vmatpush.msra.mxu0 0.0
    %238 = vmatpush.msra.mxu0 0.0
    %239 = vmatpush.msra.mxu0 0.0
    %240 = vmatpush.msra.mxu0 0.0
    %241 = vmatpush.msra.mxu0 0.0
    %242 = vmatpush.msra.mxu0 0.0
    %243 = vmatpush.msra.mxu0 0.0
    %244 = vmatpush.msra.mxu0 0.0
    %245 = vmatpush.msra.mxu0 0.0
    %246 = vmatpush.msra.mxu0 %v148
    %247 = vmatpush.msra.mxu0 %v147
    %248 = vmatpush.msra.mxu0 %v146
    %249 = vmatpush.msra.mxu0 %v145
    %250 = vmatmul.f32.gmra.mxu0 %v232
    %v251 = vpop.f32.mrf.mxu0
    %v252 = vadd.f32 0.0, %v251
    %253 = vdwg.mxu0
    %v254 = vadd.f32 %v140, %v252
    %v255 = vtanh.pop %v254
    %s256 = scalar_lea.vmem [#allocation8], 24
    %257 = vst.msk [vmem:[%s256] sm:$0xff] %vm150, %v255
    %v259 = vsel %vm150, %v255, 0
    %261 = vmatpush.msra.mxu0 0.0
    %262 = vmatpush.msra.mxu0 0.0
    %263 = vmatpush.msra.mxu0 0.0
    %264 = vmatpush.msra.mxu0 0.0
    %265 = vmatpush.msra.mxu0 0.0
    %266 = vmatpush.msra.mxu0 0.0
    %267 = vmatpush.msra.mxu0 0.0
    %268 = vmatpush.msra.mxu0 0.0
    %269 = vmatpush.msra.mxu0 0.0
    %270 = vmatpush.msra.mxu0 0.0
    %271 = vmatpush.msra.mxu0 0.0
    %272 = vmatpush.msra.mxu0 0.0
    %273 = vmatpush.msra.mxu0 %v148
    %274 = vmatpush.msra.mxu0 %v147
    %275 = vmatpush.msra.mxu0 %v146
    %276 = vmatpush.msra.mxu0 %v145
    %277 = vmatmul.f32.gmra.mxu0 %v259
    %v278 = vpop.f32.mrf.mxu0
    %v279 = vadd.f32 0.0, %v278
    %280 = vdwg.mxu0
    %v281 = vadd.f32 %v141, %v279
    %v282 = vtanh.pop %v281
    %s283 = scalar_lea.vmem [#allocation8], 32
    %284 = vst.msk [vmem:[%s283] sm:$0xff] %vm150, %v282
    %v286 = vsel %vm150, %v282, 0
    %288 = vmatpush.msra.mxu0 0.0
    %289 = vmatpush.msra.mxu0 0.0
    %290 = vmatpush.msra.mxu0 0.0
    %291 = vmatpush.msra.mxu0 0.0
    %292 = vmatpush.msra.mxu0 0.0
    %293 = vmatpush.msra.mxu0 0.0
    %294 = vmatpush.msra.mxu0 0.0
    %295 = vmatpush.msra.mxu0 0.0
    %296 = vmatpush.msra.mxu0 0.0
    %297 = vmatpush.msra.mxu0 0.0
    %298 = vmatpush.msra.mxu0 0.0
    %299 = vmatpush.msra.mxu0 0.0
    %300 = vmatpush.msra.mxu0 %v148
    %301 = vmatpush.msra.mxu0 %v147
    %302 = vmatpush.msra.mxu0 %v146
    %303 = vmatpush.msra.mxu0 %v145
    %304 = vmatmul.f32.gmra.mxu0 %v286
    %v305 = vpop.f32.mrf.mxu0
    %v306 = vadd.f32 0.0, %v305
    %307 = vdwg.mxu0
    %v308 = vadd.f32 %v142, %v306
    %v309 = vtanh.pop %v308
    %s310 = scalar_lea.vmem [#allocation8], 40
    %311 = vst.msk [vmem:[%s310] sm:$0xff] %vm150, %v309
    %v313 = vsel %vm150, %v309, 0
    %315 = vmatpush.msra.mxu0 0.0
    %316 = vmatpush.msra.mxu0 0.0
    %317 = vmatpush.msra.mxu0 0.0
    %318 = vmatpush.msra.mxu0 0.0
    %319 = vmatpush.msra.mxu0 0.0
    %320 = vmatpush.msra.mxu0 0.0
    %321 = vmatpush.msra.mxu0 0.0
    %322 = vmatpush.msra.mxu0 0.0
    %323 = vmatpush.msra.mxu0 0.0
    %324 = vmatpush.msra.mxu0 0.0
    %325 = vmatpush.msra.mxu0 0.0
    %326 = vmatpush.msra.mxu0 0.0
    %327 = vmatpush.msra.mxu0 %v148
    %328 = vmatpush.msra.mxu0 %v147
    %329 = vmatpush.msra.mxu0 %v146
    %330 = vmatpush.msra.mxu0 %v145
    %331 = vmatmul.f32.gmra.mxu0 %v313
    %v332 = vpop.f32.mrf.mxu0
    %v333 = vadd.f32 0.0, %v332
    %334 = vdwg.mxu0
    %v335 = vadd.f32 %v143, %v333
    %v336 = vtanh.pop %v335
    %s337 = scalar_lea.vmem [#allocation8], 48
    %338 = vst.msk [vmem:[%s337] sm:$0xff] %vm150, %v336
    %v340 = vsel %vm150, %v336, 0
    %342 = vmatpush.msra.mxu0 0.0
    %343 = vmatpush.msra.mxu0 0.0
    %344 = vmatpush.msra.mxu0 0.0
    %345 = vmatpush.msra.mxu0 0.0
    %346 = vmatpush.msra.mxu0 0.0
    %347 = vmatpush.msra.mxu0 0.0
    %348 = vmatpush.msra.mxu0 0.0
    %349 = vmatpush.msra.mxu0 0.0
    %350 = vmatpush.msra.mxu0 0.0
    %351 = vmatpush.msra.mxu0 0.0
    %352 = vmatpush.msra.mxu0 0.0
    %353 = vmatpush.msra.mxu0 0.0
    %354 = vmatpush.msra.mxu0 %v148
    %355 = vmatpush.msra.mxu0 %v147
    %356 = vmatpush.msra.mxu0 %v146
    %357 = vmatpush.msra.mxu0 %v145
    %358 = vmatmul.f32.gmra.mxu0 %v340
    %v359 = vpop.f32.mrf.mxu0
    %v360 = vadd.f32 0.0, %v359
    %361 = vdwg.mxu0
    %v362 = vadd.f32 %v144, %v360
    %v363 = vtanh.pop %v362
    %s364 = scalar_lea.vmem [#allocation8], 56
    %365 = vst.msk [vmem:[%s364] sm:$0xff] %vm150, %v363
    // Predicated region
    $region34: #{tpu_custom_call.1} parent=1 // pred_check
      _
    $region35: #{tpu_custom_call.1} parent=1 // pred_check_branch
      %367 = sbr.rel (0) target = $region37
    $region36: #{tpu_custom_call.1} parent=1 // pred_region
      %369 = vsyncadd [#allocation4], 0
      %s370 = sshll.u32 [#allocation8], 4
      %s371 = int_to_ptr.vmem [resolvable:$true] %s370
      %s372 = sshll.u32 %s5, 4
      %s373 = int_to_ptr.hbm [resolvable:$true] %s372
      %378 = dma.vmem_to_hbm [thread:$0]  %s371, 1024, %s373, [#allocation4], 128, 128, 8
    $region37: #{tpu_custom_call.1} parent=1 // pred_fallthru
      _
    // Predicated region
    $region38: #{tpu_custom_call.1} parent=1 // pred_check
      _
    $region39: #{tpu_custom_call.1} parent=1 // pred_check_branch
      %380 = sbr.rel (0) target = $region41
    $region40: #{tpu_custom_call.1} parent=1 // pred_region
      %382 = dma.done [#allocation4], 1024
    $region41: #{tpu_custom_call.1} parent=1 // pred_fallthru
      _
    %383 = vsyncpa [#allocation3], 1
    %384 = vsyncpa [#allocation6], 1
    %385 = vsyncpa [#allocation4], 1

</llo_original>
